<compile_context>
chip_gen: v5e
topology: v5e:2x2
jax: 0.10.0
libtpu: 0.0.40
codegen_flags: <defaults>
</compile_context>

<pallas_src>
import functools
import math

import jax
import jax.numpy as jnp
from jax.experimental import pallas as pl
from jax.experimental.pallas import tpu as pltpu

_LANES = 128
_SUBLANES = 8
_MAX_BLOCK_ROWS = 512           # 512-row tiles reach ~85% of HBM roofline
_DEFAULT_VMEM_LIMIT = 32 * 1024 * 1024
_V7X_VMEM_PHYS = 64 * 1024 * 1024


def _round_up(v, m):
    return (v + m - 1) // m * m


def _choose_tiling(batch):
    """Minimal batch padding (to 8 sublanes) and a single grid step whenever
    the whole batch fits one <=512-row tile.  The grid is a sequential loop on
    single-TC chips (v5e/v6e), so splitting a small batch only adds ~0.35 us
    per-step overhead; on v7x the 'parallel' axis is only worth sharding once
    each core gets a full-size tile of real work."""
    b8 = _round_up(max(batch, 1), _SUBLANES)
    n_steps = pl.cdiv(b8, _MAX_BLOCK_ROWS)
    block_rows = _round_up(-(-b8 // n_steps), _SUBLANES)
    return n_steps * block_rows, block_rows


def _choose_out_pad(out_dim):
    # Lane-dense (multiple-of-128) output only when out_dim is a meaningful
    # chunk of a vreg; for tiny heads (out_dim=1) an unpadded masked store is
    # far cheaper than a 128x write-amplified f32 slab.
    if out_dim >= 64:
        return _round_up(out_dim, _LANES)
    return out_dim


def _mlp_kernel(x_ref, w1_ref, b1_ref, w2_ref, b2_ref, w3_ref, b3_ref, o_ref):
    # Cast x to the MXU dtype inside the kernel (VPU cast on a VMEM tile is
    # essentially free); avoids a separate wrapper-side HBM pass over x.
    x = x_ref[...].astype(w1_ref.dtype)
    # Layer 1: Linear + ReLU (bf16 MXU matmul, f32 accumulation / bias / ReLU).
    h = jnp.dot(x, w1_ref[...], preferred_element_type=jnp.float32)
    h = jnp.maximum(h + b1_ref[...], 0.0).astype(w2_ref.dtype)
    # Layer 2: Linear + ReLU.
    h = jnp.dot(h, w2_ref[...], preferred_element_type=jnp.float32)
    h = jnp.maximum(h + b2_ref[...], 0.0).astype(w3_ref.dtype)
    # Output layer: Linear, no activation.
    y = jnp.dot(h, w3_ref[...], preferred_element_type=jnp.float32) + b3_ref[...]
    o_ref[...] = y.astype(o_ref.dtype)


@functools.lru_cache(maxsize=None)
def _build_call(batch_pad, d_in, hidden, out_pad, block_rows,
                x_dtype_name, w_dtype_name, out_dtype_name):
    x_bytes = jnp.dtype(x_dtype_name).itemsize
    w_bytes = jnp.dtype(w_dtype_name).itemsize
    o_bytes = jnp.dtype(out_dtype_name).itemsize

    # VMEM working set with default double-buffering on every block.
    vmem_est = 2 * (
        block_rows * d_in * x_bytes
        + block_rows * out_pad * o_bytes
        + (d_in * hidden + hidden * hidden + hidden * out_pad) * w_bytes
        + (2 * hidden + out_pad) * 4)

    cp_kwargs = dict(dimension_semantics=("parallel",))
    if vmem_est > _DEFAULT_VMEM_LIMIT:
        # TODO(synk): once W2 alone approaches ~24 MiB (hidden >= ~2048 on
        # v7x's 64 MiB VMEM), add a K-reduction grid axis over `hidden` with a
        # VMEM accumulator (pl.when init/finalize) instead of raising the
        # limit further.
        cp_kwargs["vmem_limit_bytes"] = min(int(vmem_est * 1.25), _V7X_VMEM_PHYS)

    grid = (batch_pad // block_rows,)
    return pl.pallas_call(
        _mlp_kernel,
        out_shape=jax.ShapeDtypeStruct((batch_pad, out_pad),
                                       jnp.dtype(out_dtype_name)),
        grid_spec=pltpu.PrefetchScalarGridSpec(
            num_scalar_prefetch=0,
            grid=grid,
            in_specs=[
                pl.BlockSpec((block_rows, d_in), lambda i: (i, 0)),  # x tile
                pl.BlockSpec((d_in, hidden), lambda i: (0, 0)),      # W1 (resident)
                pl.BlockSpec((1, hidden), lambda i: (0, 0)),         # b1
                pl.BlockSpec((hidden, hidden), lambda i: (0, 0)),    # W2 (resident)
                pl.BlockSpec((1, hidden), lambda i: (0, 0)),         # b2
                pl.BlockSpec((hidden, out_pad), lambda i: (0, 0)),   # W3 (resident)
                pl.BlockSpec((1, out_pad), lambda i: (0, 0)),        # b3
            ],
            out_specs=pl.BlockSpec((block_rows, out_pad), lambda i: (i, 0)),
        ),
        compiler_params=pltpu.CompilerParams(**cp_kwargs),
    )


def prepare_mlp_params(w1, b1, w2, b2, w3, b3, compute_dtype=jnp.bfloat16):
    """One-time parameter prep: weights -> compute_dtype (MXU input dtype),
    biases -> f32 row vectors (added to f32 accumulators).  Doing this at
    setup keeps per-forward calls from re-launching 6 small cast ops and
    re-streaming the constant weights through HBM."""
    cast_w = lambda w: jnp.asarray(w, compute_dtype)
    cast_b = lambda b: jnp.asarray(b, jnp.float32).reshape(1, -1)
    return (cast_w(w1), cast_b(b1), cast_w(w2), cast_b(b2),
            cast_w(w3), cast_b(b3))


def mlp_pallas(x, params):
    """y = relu(x@W1+b1) -> relu(.@W2+b2) -> .@W3+b3, returned in x.dtype."""
    w1, b1, w2, b2, w3, b3 = params
    B, d_in = x.shape
    hidden = w1.shape[1]
    out_dim = w3.shape[1]
    out_dtype = x.dtype

    batch_pad, block_rows = _choose_tiling(B)
    out_pad = _choose_out_pad(out_dim)

    x_in = x
    if batch_pad != B:
        # Pad only to the next multiple of 8 sublanes (plus block rounding for
        # very large batches), never a full block of junk rows.
        x_in = jnp.pad(x, ((0, batch_pad - B), (0, 0)))

    w3_in, b3_in = w3, b3
    if out_pad != out_dim:
        w3_in = jnp.pad(w3, ((0, 0), (0, out_pad - out_dim)))
        b3_in = jnp.pad(b3, ((0, 0), (0, out_pad - out_dim)))

    call = _build_call(batch_pad, d_in, hidden, out_pad, block_rows,
                       jnp.dtype(x.dtype).name, jnp.dtype(w1.dtype).name,
                       jnp.dtype(out_dtype).name)
    y = call(x_in, w1, b1, w2, b2, w3_in, b3_in)

    if batch_pad != B or out_pad != out_dim:
        y = y[:B, :out_dim]
    return y


def mlp_reference(x, params):
    """Pure-JAX reference with the same mixed-precision recipe as the kernel."""
    w1, b1, w2, b2, w3, b3 = params
    h = jnp.dot(x.astype(w1.dtype), w1, preferred_element_type=jnp.float32)
    h = jnp.maximum(h + b1.astype(jnp.float32), 0.0).astype(w2.dtype)
    h = jnp.dot(h, w2, preferred_element_type=jnp.float32)
    h = jnp.maximum(h + b2.astype(jnp.float32), 0.0).astype(w3.dtype)
    y = jnp.dot(h, w3, preferred_element_type=jnp.float32) + b3.astype(jnp.float32)
    return y.astype(x.dtype)


def init_linear(key, fan_in, fan_out):
    """Deterministic init mimicking PyTorch nn.Linear (uniform +-1/sqrt(fan_in)).
    Weight returned as (fan_in, fan_out), i.e. already transposed for x @ W."""
    kw, kb = jax.random.split(key)
    bound = 1.0 / math.sqrt(fan_in)
    w = jax.random.uniform(kw, (fan_in, fan_out), jnp.float32, -bound, bound)
    b = jax.random.uniform(kb, (1, fan_out), jnp.float32, -bound, bound)
    return w, b


if __name__ == "__main__":
    # Module defaults: MLP(input_dim=128, hidden_dim=128, out_dim=1, depth=2),
    # applied to a small batch of feature vectors.
    B, input_dim, hidden_dim, out_dim = 16, 128, 128, 1

    root = jax.random.PRNGKey(0)
    kx, k1, k2, k3 = jax.random.split(root, 4)

    x = jax.random.normal(kx, (B, input_dim), jnp.float32)
    w1, b1 = init_linear(k1, input_dim, hidden_dim)
    w2, b2 = init_linear(k2, hidden_dim, hidden_dim)
    w3, b3 = init_linear(k3, hidden_dim, out_dim)

    # One-time parameter prep (bf16 weights, f32 biases).
    params = prepare_mlp_params(w1, b1, w2, b2, w3, b3)

    y = jax.block_until_ready(mlp_pallas(x, params))
    ref = mlp_reference(x, params)
    assert y.shape == (B, out_dim), y.shape
    assert jnp.allclose(y, ref, atol=1e-3, rtol=1e-3), float(
        jnp.max(jnp.abs(y - ref)))

    # Also exercise a batch that is not a multiple of 8 (padding path).
    x_odd = jax.random.normal(jax.random.PRNGKey(1), (10, input_dim), jnp.float32)
    y_odd = jax.block_until_ready(mlp_pallas(x_odd, params))
    ref_odd = mlp_reference(x_odd, params)
    assert y_odd.shape == (10, out_dim), y_odd.shape
    assert jnp.allclose(y_odd, ref_odd, atol=1e-3, rtol=1e-3), float(
        jnp.max(jnp.abs(y_odd - ref_odd)))

    print("KERNEL_OK")
</pallas_src>

<mosaic_0001>
module attributes {stable_mosaic.version = 11 : i64} {
  func.func @_mlp_kernel(%arg0: i32, %arg1: memref<16x128xf32, #tpu.memory_space<vmem>>, %arg2: memref<128x128xbf16, #tpu.memory_space<vmem>>, %arg3: memref<1x128xf32, #tpu.memory_space<vmem>>, %arg4: memref<128x128xbf16, #tpu.memory_space<vmem>>, %arg5: memref<1x128xf32, #tpu.memory_space<vmem>>, %arg6: memref<128x1xbf16, #tpu.memory_space<vmem>>, %arg7: memref<1x1xf32, #tpu.memory_space<vmem>>, %arg8: memref<16x1xf32, #tpu.memory_space<vmem>>) attributes {dimension_semantics = [#tpu.dimension_semantics<parallel>], iteration_bounds = array<i64: 1>, scalar_prefetch = 0 : i64, scratch_operands = 0 : i64, tpu.core_type = #tpu.core_type<tc>, window_params = [{transform_indices = @transform_0, window_bounds = array<i64: 16, 128>}, {pipeline_mode = #tpu.pipeline_mode<synchronous>, transform_indices = @transform_1, window_bounds = array<i64: 128, 128>}, {pipeline_mode = #tpu.pipeline_mode<synchronous>, transform_indices = @transform_2, window_bounds = array<i64: 1, 128>}, {pipeline_mode = #tpu.pipeline_mode<synchronous>, transform_indices = @transform_3, window_bounds = array<i64: 128, 128>}, {pipeline_mode = #tpu.pipeline_mode<synchronous>, transform_indices = @transform_4, window_bounds = array<i64: 1, 128>}, {pipeline_mode = #tpu.pipeline_mode<synchronous>, transform_indices = @transform_5, window_bounds = array<i64: 128, 1>}, {pipeline_mode = #tpu.pipeline_mode<synchronous>, transform_indices = @transform_6, window_bounds = array<i64: 1, 1>}, {transform_indices = @transform_7, window_bounds = array<i64: 16, 1>}]} {
    %c0 = arith.constant 0 : index
    %c0_0 = arith.constant 0 : index
    %0 = vector.load %arg1[%c0, %c0_0] : memref<16x128xf32, #tpu.memory_space<vmem>>, vector<16x128xf32>
    %1 = arith.truncf %0 : vector<16x128xf32> to vector<16x128xbf16>
    %c0_1 = arith.constant 0 : index
    %c0_2 = arith.constant 0 : index
    %2 = vector.load %arg2[%c0_1, %c0_2] : memref<128x128xbf16, #tpu.memory_space<vmem>>, vector<128x128xbf16>
    %cst = arith.constant dense<0.000000e+00> : vector<16x128xf32>
    %3 = tpu.matmul %1, %2, %cst {dimension_numbers = #tpu.dot_dimension_numbers<[1], [0], [0], [1], [0, 0, 1, 1], [], []>} : vector<16x128xbf16>, vector<128x128xbf16>, vector<16x128xf32> -> vector<16x128xf32>
    %c0_3 = arith.constant 0 : index
    %c0_4 = arith.constant 0 : index
    %4 = vector.load %arg3[%c0_3, %c0_4] : memref<1x128xf32, #tpu.memory_space<vmem>>, vector<1x128xf32>
    %5 = vector.broadcast %4 : vector<1x128xf32> to vector<16x128xf32>
    %6 = arith.addf %3, %5 : vector<16x128xf32>
    %cst_5 = arith.constant 0.000000e+00 : f32
    %7 = vector.broadcast %cst_5 : f32 to vector<16x128xf32>
    %8 = arith.maximumf %6, %7 : vector<16x128xf32>
    %9 = arith.truncf %8 : vector<16x128xf32> to vector<16x128xbf16>
    %c0_6 = arith.constant 0 : index
    %c0_7 = arith.constant 0 : index
    %10 = vector.load %arg4[%c0_6, %c0_7] : memref<128x128xbf16, #tpu.memory_space<vmem>>, vector<128x128xbf16>
    %cst_8 = arith.constant dense<0.000000e+00> : vector<16x128xf32>
    %11 = tpu.matmul %9, %10, %cst_8 {dimension_numbers = #tpu.dot_dimension_numbers<[1], [0], [0], [1], [0, 0, 1, 1], [], []>} : vector<16x128xbf16>, vector<128x128xbf16>, vector<16x128xf32> -> vector<16x128xf32>
    %c0_9 = arith.constant 0 : index
    %c0_10 = arith.constant 0 : index
    %12 = vector.load %arg5[%c0_9, %c0_10] : memref<1x128xf32, #tpu.memory_space<vmem>>, vector<1x128xf32>
    %13 = vector.broadcast %12 : vector<1x128xf32> to vector<16x128xf32>
    %14 = arith.addf %11, %13 : vector<16x128xf32>
    %cst_11 = arith.constant 0.000000e+00 : f32
    %15 = vector.broadcast %cst_11 : f32 to vector<16x128xf32>
    %16 = arith.maximumf %14, %15 : vector<16x128xf32>
    %17 = arith.truncf %16 : vector<16x128xf32> to vector<16x128xbf16>
    %c0_12 = arith.constant 0 : index
    %c0_13 = arith.constant 0 : index
    %18 = vector.load %arg6[%c0_12, %c0_13] : memref<128x1xbf16, #tpu.memory_space<vmem>>, vector<128x1xbf16>
    %cst_14 = arith.constant dense<0.000000e+00> : vector<16x1xf32>
    %19 = tpu.matmul %17, %18, %cst_14 {dimension_numbers = #tpu.dot_dimension_numbers<[1], [0], [0], [1], [0, 0, 1, 1], [], []>} : vector<16x128xbf16>, vector<128x1xbf16>, vector<16x1xf32> -> vector<16x1xf32>
    %c0_15 = arith.constant 0 : index
    %c0_16 = arith.constant 0 : index
    %20 = vector.load %arg7[%c0_15, %c0_16] : memref<1x1xf32, #tpu.memory_space<vmem>>, vector<1x1xf32>
    %21 = vector.broadcast %20 : vector<1x1xf32> to vector<16x1xf32>
    %22 = arith.addf %19, %21 : vector<16x1xf32>
    %c0_17 = arith.constant 0 : index
    %c0_18 = arith.constant 0 : index
    %23 = vector.load %arg8[%c0_17, %c0_18] : memref<16x1xf32, #tpu.memory_space<vmem>>, vector<16x1xf32>
    tpu.vector_store %arg8[%c0_17, %c0_18], %22 {strides = array<i32>} : memref<16x1xf32, #tpu.memory_space<vmem>>, vector<16x1xf32>,
    return
  }
  func.func @transform_0(%arg0: i32) -> (i32, i32) {
    %c0_i32 = arith.constant 0 : i32
    %c0_i32_0 = arith.constant 0 : i32
    return %arg0, %c0_i32 : i32, i32
  }
  func.func @transform_1(%arg0: i32) -> (i32, i32) {
    %c0_i32 = arith.constant 0 : i32
    %c0_i32_0 = arith.constant 0 : i32
    %c0_i32_1 = arith.constant 0 : i32
    return %c0_i32, %c0_i32_0 : i32, i32
  }
  func.func @transform_2(%arg0: i32) -> (i32, i32) {
    %c0_i32 = arith.constant 0 : i32
    %c0_i32_0 = arith.constant 0 : i32
    %c0_i32_1 = arith.constant 0 : i32
    return %c0_i32, %c0_i32_0 : i32, i32
  }
  func.func @transform_3(%arg0: i32) -> (i32, i32) {
    %c0_i32 = arith.constant 0 : i32
    %c0_i32_0 = arith.constant 0 : i32
    %c0_i32_1 = arith.constant 0 : i32
    return %c0_i32, %c0_i32_0 : i32, i32
  }
  func.func @transform_4(%arg0: i32) -> (i32, i32) {
    %c0_i32 = arith.constant 0 : i32
    %c0_i32_0 = arith.constant 0 : i32
    %c0_i32_1 = arith.constant 0 : i32
    return %c0_i32, %c0_i32_0 : i32, i32
  }
  func.func @transform_5(%arg0: i32) -> (i32, i32) {
    %c0_i32 = arith.constant 0 : i32
    %c0_i32_0 = arith.constant 0 : i32
    %c0_i32_1 = arith.constant 0 : i32
    return %c0_i32, %c0_i32_0 : i32, i32
  }
  func.func @transform_6(%arg0: i32) -> (i32, i32) {
    %c0_i32 = arith.constant 0 : i32
    %c0_i32_0 = arith.constant 0 : i32
    %c0_i32_1 = arith.constant 0 : i32
    return %c0_i32, %c0_i32_0 : i32, i32
  }
  func.func @transform_7(%arg0: i32) -> (i32, i32) {
    %c0_i32 = arith.constant 0 : i32
    %c0_i32_0 = arith.constant 0 : i32
    return %arg0, %c0_i32 : i32, i32
  }
}

</mosaic_0001>

<llo_original>
// kernel: tpu_custom_call.1
$region0: #{tpu_custom_call.1}
  #allocation0 [shape = 'u32[]', space=smem, size = 0x4, offset = 0x4, fixed_abs, tag = 'smem constant byte address 0x4 - core index']
  #allocation1 [shape = 'u32[72,128]{1,0:T(1,128)}', space=vmem, size = 0x9000, scoped, tag = 'internal scratch']
  #allocation2 [shape = 'f32[1,1]{1,0:T(1,128)S(1)}', space=vmem, size = 0x200, scoped, tag = 'scoped memory for tpu_custom_call.1']
  %s0 = inlined_call_operand.hbm [shape: f32[16,128], index: 0, kind: input, shape index: {}]
  %s1 = inlined_call_operand.vmem [shape: bf16[128,128], index: 1, kind: input, shape index: {}]
  %s2 = inlined_call_operand.vmem [shape: f32[1,128], index: 2, kind: input, shape index: {}]
  %s3 = inlined_call_operand.hbm [shape: bf16[128,128], index: 3, kind: input, shape index: {}]
  %s4 = inlined_call_operand.vmem [shape: f32[1,128], index: 4, kind: input, shape index: {}]
  %s5 = inlined_call_operand.vmem [shape: bf16[128,1], index: 5, kind: input, shape index: {}]
  %s6 = inlined_call_operand.<no memory space> [shape: f32[1,1], index: 6, kind: input, shape index: {}]
  %s7 = inlined_call_operand.vmem [shape: f32[16,1], index: 7, kind: output, shape index: {}]
  %s8 = sld [smem:[#allocation0]]
  $region46: #{tpu_custom_call.1} parent=0
    _
  %s10 = ssub.s32 1, %s8
  %s11 = scalar_select 0, %s10, %s8
  %v12 = vstv %s6
  %13 = vst [vmem:[#allocation2] sm:$0x1] %v12
  $region1: #{tpu_custom_call.1} parent=0
    #allocation3 [shape = 'u8[8192]{0}', space=vmem, size = 0x2000, scoped, tag = 'input window, operand 0, single buffered']
    #allocation4 [shape = 's32[1]{0}', space=sflag, size = 0x4, scoped, tag = 'scoped memory for tpu_custom_call.1']
    #allocation5 [shape = 'u8[32768]{0}', space=vmem, size = 0x8000, scoped, tag = 'input window, operand 3, single buffered']
    #allocation6 [shape = 's32[1]{0}', space=sflag, size = 0x4, scoped, tag = 'scoped memory for tpu_custom_call.1']
    %14 = vsyncpa [#allocation4], 0
    %15 = vsyncpa [#allocation6], 0
    // Predicated region
    $region2: #{tpu_custom_call.1} parent=1 // pred_check
      _
    $region3: #{tpu_custom_call.1} parent=1 // pred_check_branch
      %17 = sbr.rel (0) target = $region5
    $region4: #{tpu_custom_call.1} parent=1 // pred_region
      %19 = vsyncadd [#allocation4], 0
      %s20 = sshll.u32 %s0, 4
      %s21 = int_to_ptr.hbm [resolvable:$true] %s20
      %s22 = sshll.u32 [#allocation3], 4
      %s23 = int_to_ptr.vmem [resolvable:$true] %s22
      %28 = dma.hbm_to_vmem [thread:$0]  %s21, 256, %s23, [#allocation4], 128, 128, 8
    $region5: #{tpu_custom_call.1} parent=1 // pred_fallthru
      _
    // Predicated region
    $region6: #{tpu_custom_call.1} parent=1 // pred_check
      _
    $region7: #{tpu_custom_call.1} parent=1 // pred_check_branch
      %30 = sbr.rel (0) target = $region9
    $region8: #{tpu_custom_call.1} parent=1 // pred_region
      _
    $region9: #{tpu_custom_call.1} parent=1 // pred_fallthru
      _
    // Predicated region
    $region10: #{tpu_custom_call.1} parent=1 // pred_check
      _
    $region11: #{tpu_custom_call.1} parent=1 // pred_check_branch
      %32 = sbr.rel (0) target = $region13
    $region12: #{tpu_custom_call.1} parent=1 // pred_region
      _
    $region13: #{tpu_custom_call.1} parent=1 // pred_fallthru
      _
    // Predicated region
    $region14: #{tpu_custom_call.1} parent=1 // pred_check
      _
    $region15: #{tpu_custom_call.1} parent=1 // pred_check_branch
      %34 = sbr.rel (0) target = $region17
    $region16: #{tpu_custom_call.1} parent=1 // pred_region
      %36 = vsyncadd [#allocation6], 0
      %s37 = sshll.u32 %s3, 4
      %s38 = int_to_ptr.hbm [resolvable:$true] %s37
      %s39 = sshll.u32 [#allocation5], 4
      %s40 = int_to_ptr.vmem [resolvable:$true] %s39
      %45 = dma.hbm_to_vmem [thread:$0]  %s38, 1024, %s40, [#allocation6], 64, 64, 4
    $region17: #{tpu_custom_call.1} parent=1 // pred_fallthru
      _
    // Predicated region
    $region18: #{tpu_custom_call.1} parent=1 // pred_check
      _
    $region19: #{tpu_custom_call.1} parent=1 // pred_check_branch
      %47 = sbr.rel (0) target = $region21
    $region20: #{tpu_custom_call.1} parent=1 // pred_region
      _
    $region21: #{tpu_custom_call.1} parent=1 // pred_fallthru
      _
    // Predicated region
    $region22: #{tpu_custom_call.1} parent=1 // pred_check
      _
    $region23: #{tpu_custom_call.1} parent=1 // pred_check_branch
      %49 = sbr.rel (0) target = $region25
    $region24: #{tpu_custom_call.1} parent=1 // pred_region
      _
    $region25: #{tpu_custom_call.1} parent=1 // pred_fallthru
      _
    // Predicated region
    $region26: #{tpu_custom_call.1} parent=1 // pred_check
      _
    $region27: #{tpu_custom_call.1} parent=1 // pred_check_branch
      %51 = sbr.rel (0) target = $region29
    $region28: #{tpu_custom_call.1} parent=1 // pred_region
      _
    $region29: #{tpu_custom_call.1} parent=1 // pred_fallthru
      _
    // Predicated region
    $region30: #{tpu_custom_call.1} parent=1 // pred_check
      _
    $region31: #{tpu_custom_call.1} parent=1 // pred_check_branch
      %53 = sbr.rel (0) target = $region33
    $region32: #{tpu_custom_call.1} parent=1 // pred_region
      %55 = dma.done [#allocation4], 256
    $region33: #{tpu_custom_call.1} parent=1 // pred_fallthru
      _
    // Predicated region
    $region34: #{tpu_custom_call.1} parent=1 // pred_check
      _
    $region35: #{tpu_custom_call.1} parent=1 // pred_check_branch
      %57 = sbr.rel (0) target = $region37
    $region36: #{tpu_custom_call.1} parent=1 // pred_region
      %59 = dma.done [#allocation6], 1024
    $region37: #{tpu_custom_call.1} parent=1 // pred_fallthru
      _
    %v60 = vld [vmem:[#allocation3] sm:$0xff]
    %v61 = vld [vmem:[#allocation3 + $0x8] sm:$0xff]
    %v62 = vpack.c.bf16 %v61, %v60
    %v63 = vld [vmem:[%s1] sm:$0xf]
    %v64 = vld [vmem:[%s1 + $0x4] sm:$0xf]
    %v65 = vld [vmem:[%s1 + $0x8] sm:$0xf]
    %v66 = vld [vmem:[%s1 + $0xc] sm:$0xf]
    %v67 = vld [vmem:[%s1 + $0x10] sm:$0xf]
    %v68 = vld [vmem:[%s1 + $0x14] sm:$0xf]
    %v69 = vld [vmem:[%s1 + $0x18] sm:$0xf]
    %v70 = vld [vmem:[%s1 + $0x1c] sm:$0xf]
    %v71 = vld [vmem:[%s1 + $0x20] sm:$0xf]
    %v72 = vld [vmem:[%s1 + $0x24] sm:$0xf]
    %v73 = vld [vmem:[%s1 + $0x28] sm:$0xf]
    %v74 = vld [vmem:[%s1 + $0x2c] sm:$0xf]
    %v75 = vld [vmem:[%s1 + $0x30] sm:$0xf]
    %v76 = vld [vmem:[%s1 + $0x34] sm:$0xf]
    %v77 = vld [vmem:[%s1 + $0x38] sm:$0xf]
    %v78 = vld [vmem:[%s1 + $0x3c] sm:$0xf]
    %v79 = vld [vmem:[%s2] sm:$0x1]
    %v81 = vperm.slane %v79, 0
    %v99 = vunpack.c.l.b16 %v63
    %v100 = vunpack.c.l.b16 %v64
    %v101 = vunpack.c.l.b16 %v65
    %v102 = vunpack.c.l.b16 %v66
    %v103 = vunpack.c.l.b16 %v67
    %v104 = vunpack.c.l.b16 %v68
    %v105 = vunpack.c.l.b16 %v69
    %v106 = vunpack.c.l.b16 %v70
    %v107 = vunpack.c.l.b16 %v71
    %v108 = vunpack.c.l.b16 %v72
    %v109 = vunpack.c.l.b16 %v73
    %v110 = vunpack.c.l.b16 %v74
    %v111 = vunpack.c.l.b16 %v75
    %v112 = vunpack.c.l.b16 %v76
    %v113 = vunpack.c.l.b16 %v77
    %v114 = vunpack.c.l.b16 %v78
    %v115 = vpack.c.b16 %v100, %v99
    %v116 = vpack.c.b16 %v102, %v101
    %v117 = vpack.c.b16 %v104, %v103
    %v118 = vpack.c.b16 %v106, %v105
    %v119 = vpack.c.b16 %v108, %v107
    %v120 = vpack.c.b16 %v110, %v109
    %v121 = vpack.c.b16 %v112, %v111
    %v122 = vpack.c.b16 %v114, %v113
    %131 = vmatpush.bf16.msra.mxu0 %v122
    %132 = vmatpush.bf16.msra.mxu0 %v121
    %133 = vmatpush.bf16.msra.mxu0 %v120
    %134 = vmatpush.bf16.msra.mxu0 %v119
    %135 = vmatpush.bf16.msra.mxu0 %v118
    %136 = vmatpush.bf16.msra.mxu0 %v117
    %137 = vmatpush.bf16.msra.mxu0 %v116
    %138 = vmatpush.bf16.msra.mxu0 %v115
    %139 = vmatmul.bf16.gmra.mxu0 %v62
    %v140 = vpop.f32.mrf.mxu0
    %v141 = vadd.f32 %v81, %v140
    %v142 = vpop.f32.mrf.mxu0
    %v143 = vadd.f32 %v81, %v142
    %144 = vdwg.mxu0
    %v145 = vmax.f32 %v141, 0.0
    %v146 = vmax.f32 %v143, 0.0
    %v147 = vpack.c.bf16 %v146, %v145
    %v148 = vld [vmem:[#allocation5] sm:$0xf]
    %v149 = vld [vmem:[#allocation5 + $0x4] sm:$0xf]
    %v150 = vld [vmem:[#allocation5 + $0x8] sm:$0xf]
    %v151 = vld [vmem:[#allocation5 + $0xc] sm:$0xf]
    %v152 = vld [vmem:[#allocation5 + $0x10] sm:$0xf]
    %v153 = vld [vmem:[#allocation5 + $0x14] sm:$0xf]
    %v154 = vld [vmem:[#allocation5 + $0x18] sm:$0xf]
    %v155 = vld [vmem:[#allocation5 + $0x1c] sm:$0xf]
    %v156 = vld [vmem:[#allocation5 + $0x20] sm:$0xf]
    %v157 = vld [vmem:[#allocation5 + $0x24] sm:$0xf]
    %v158 = vld [vmem:[#allocation5 + $0x28] sm:$0xf]
    %v159 = vld [vmem:[#allocation5 + $0x2c] sm:$0xf]
    %v160 = vld [vmem:[#allocation5 + $0x30] sm:$0xf]
    %v161 = vld [vmem:[#allocation5 + $0x34] sm:$0xf]
    %v162 = vld [vmem:[#allocation5 + $0x38] sm:$0xf]
    %v163 = vld [vmem:[#allocation5 + $0x3c] sm:$0xf]
    %v164 = vld [vmem:[%s4] sm:$0x1]
    %v166 = vperm.slane %v164, 0
    %v184 = vunpack.c.l.b16 %v148
    %v185 = vunpack.c.l.b16 %v149
    %v186 = vunpack.c.l.b16 %v150
    %v187 = vunpack.c.l.b16 %v151
    %v188 = vunpack.c.l.b16 %v152
    %v189 = vunpack.c.l.b16 %v153
    %v190 = vunpack.c.l.b16 %v154
    %v191 = vunpack.c.l.b16 %v155
    %v192 = vunpack.c.l.b16 %v156
    %v193 = vunpack.c.l.b16 %v157
    %v194 = vunpack.c.l.b16 %v158
    %v195 = vunpack.c.l.b16 %v159
    %v196 = vunpack.c.l.b16 %v160
    %v197 = vunpack.c.l.b16 %v161
    %v198 = vunpack.c.l.b16 %v162
    %v199 = vunpack.c.l.b16 %v163
    %v200 = vpack.c.b16 %v185, %v184
    %v201 = vpack.c.b16 %v187, %v186
    %v202 = vpack.c.b16 %v189, %v188
    %v203 = vpack.c.b16 %v191, %v190
    %v204 = vpack.c.b16 %v193, %v192
    %v205 = vpack.c.b16 %v195, %v194
    %v206 = vpack.c.b16 %v197, %v196
    %v207 = vpack.c.b16 %v199, %v198
    %216 = vmatpush.bf16.msra.mxu0 %v207
    %217 = vmatpush.bf16.msra.mxu0 %v206
    %218 = vmatpush.bf16.msra.mxu0 %v205
    %219 = vmatpush.bf16.msra.mxu0 %v204
    %220 = vmatpush.bf16.msra.mxu0 %v203
    %221 = vmatpush.bf16.msra.mxu0 %v202
    %222 = vmatpush.bf16.msra.mxu0 %v201
    %223 = vmatpush.bf16.msra.mxu0 %v200
    %224 = vmatmul.bf16.gmra.mxu0 %v147
    %v225 = vpop.f32.mrf.mxu0
    %v226 = vadd.f32 %v166, %v225
    %v227 = vpop.f32.mrf.mxu0
    %v228 = vadd.f32 %v166, %v227
    %229 = vdwg.mxu0
    %v230 = vmax.f32 %v226, 0.0
    %v231 = vmax.f32 %v228, 0.0
    %v232 = vpack.c.bf16 %v231, %v230
    %v233 = vld [vmem:[%s5] sm:$0xf]
    %v234 = vld [vmem:[%s5 + $0x4] sm:$0xf]
    %v235 = vld [vmem:[%s5 + $0x8] sm:$0xf]
    %v236 = vld [vmem:[%s5 + $0xc] sm:$0xf]
    %v237 = vld [vmem:[%s5 + $0x10] sm:$0xf]
    %v238 = vld [vmem:[%s5 + $0x14] sm:$0xf]
    %v239 = vld [vmem:[%s5 + $0x18] sm:$0xf]
    %v240 = vld [vmem:[%s5 + $0x1c] sm:$0xf]
    %v241 = vld [vmem:[%s5 + $0x20] sm:$0xf]
    %v242 = vld [vmem:[%s5 + $0x24] sm:$0xf]
    %v243 = vld [vmem:[%s5 + $0x28] sm:$0xf]
    %v244 = vld [vmem:[%s5 + $0x2c] sm:$0xf]
    %v245 = vld [vmem:[%s5 + $0x30] sm:$0xf]
    %v246 = vld [vmem:[%s5 + $0x34] sm:$0xf]
    %v247 = vld [vmem:[%s5 + $0x38] sm:$0xf]
    %v248 = vld [vmem:[%s5 + $0x3c] sm:$0xf]
    %v249 = vld [vmem:[#allocation2] sm:$0x1]
    %v251 = vperm.slane %v249, 0
    %v269 = vunpack.c.l.b16 %v233
    %v270 = vunpack.c.l.b16 %v234
    %v271 = vunpack.c.l.b16 %v235
    %v272 = vunpack.c.l.b16 %v236
    %v273 = vunpack.c.l.b16 %v237
    %v274 = vunpack.c.l.b16 %v238
    %v275 = vunpack.c.l.b16 %v239
    %v276 = vunpack.c.l.b16 %v240
    %v277 = vunpack.c.l.b16 %v241
    %v278 = vunpack.c.l.b16 %v242
    %v279 = vunpack.c.l.b16 %v243
    %v280 = vunpack.c.l.b16 %v244
    %v281 = vunpack.c.l.b16 %v245
    %v282 = vunpack.c.l.b16 %v246
    %v283 = vunpack.c.l.b16 %v247
    %v284 = vunpack.c.l.b16 %v248
    %v285 = vpack.c.b16 %v270, %v269
    %v286 = vpack.c.b16 %v272, %v271
    %v287 = vpack.c.b16 %v274, %v273
    %v288 = vpack.c.b16 %v276, %v275
    %v289 = vpack.c.b16 %v278, %v277
    %v290 = vpack.c.b16 %v280, %v279
    %v291 = vpack.c.b16 %v282, %v281
    %v292 = vpack.c.b16 %v284, %v283
    %301 = vmatpush.bf16.msra.mxu0 %v292
    %302 = vmatpush.bf16.msra.mxu0 %v291
    %303 = vmatpush.bf16.msra.mxu0 %v290
    %304 = vmatpush.bf16.msra.mxu0 %v289
    %305 = vmatpush.bf16.msra.mxu0 %v288
    %306 = vmatpush.bf16.msra.mxu0 %v287
    %307 = vmatpush.bf16.msra.mxu0 %v286
    %308 = vmatpush.bf16.msra.mxu0 %v285
    %309 = vmatmul.bf16.gmra.mxu0 %v232
    %v310 = vpop.f32.mrf.mxu0
    %v311 = vadd.f32 %v251, %v310
    %v312 = vpop.f32.mrf.mxu0
    %v313 = vadd.f32 %v251, %v312
    %314 = vdwg.mxu0
    %vm315 = vcmask 7168
    %316 = vst.msk [vmem:[%s7] sm:$0xff] %vm315, %v311
    %317 = vst.msk [vmem:[%s7 + $0x8] sm:$0xff] %vm315, %v313
    // Predicated region
    $region38: #{tpu_custom_call.1} parent=1 // pred_check
      _
    $region39: #{tpu_custom_call.1} parent=1 // pred_check_branch
      %319 = sbr.rel (0) target = $region41
    $region40: #{tpu_custom_call.1} parent=1 // pred_region
      _
    $region41: #{tpu_custom_call.1} parent=1 // pred_fallthru
      _
    // Predicated region
    $region42: #{tpu_custom_call.1} parent=1 // pred_check
      _
    $region43: #{tpu_custom_call.1} parent=1 // pred_check_branch
      %321 = sbr.rel (0) target = $region45
    $region44: #{tpu_custom_call.1} parent=1 // pred_region
      _
    $region45: #{tpu_custom_call.1} parent=1 // pred_fallthru
      _
    %322 = vsyncpa [#allocation4], 1
    %323 = vsyncpa [#allocation6], 1

</llo_original>
